<compile_context>
chip_gen: v7x
topology: tpu7x:2x2x1
jax: 0.10.0
libtpu: 0.0.40
codegen_flags: <defaults>
</compile_context>

<pallas_src>
import functools

import jax
import jax.numpy as jnp
from jax.experimental import pallas as pl
from jax.experimental.pallas import tpu as pltpu

LOG_ALPHABETA_MAX = 10.0
LOG_ALPHABETA_MIN = -10.0


def _round_up(x, m):
    return ((x + m - 1) // m) * m


def _beta_policy_kernel(state_ref, w_ref, b_ref, out_ref, *, num_inputs):
    """state_ref: [B, num_inputs]; w_ref: [3, D, D]; b_ref: [3, D];
    out_ref: [B, D] with lanes [0:A]=log_alpha, [A:2A]=log_beta, rest zero."""
    x = state_ref[...]

    # input layer + ReLU.  Static sublane slice of the packed weight so the
    # state never needs feature padding (slab rows >= num_inputs are zero).
    w0 = w_ref[0][:num_inputs, :]
    h = jnp.dot(x, w0, preferred_element_type=jnp.float32)
    h = jnp.maximum(h + b_ref[0:1, :], 0.0)

    # hidden layer + ReLU   (num_hidden=2 -> exactly one hidden Linear)
    h = jnp.dot(h, w_ref[1], preferred_element_type=jnp.float32)
    h = jnp.maximum(h + b_ref[1:2, :], 0.0)

    # fused heads: [w_alpha | w_beta] in one matmul, then clamp
    heads = jnp.dot(h, w_ref[2], preferred_element_type=jnp.float32)
    heads = heads + b_ref[2:3, :]
    heads = jnp.clip(heads, LOG_ALPHABETA_MIN, LOG_ALPHABETA_MAX)

    out_ref[...] = heads.astype(out_ref.dtype)


@functools.partial(jax.jit, static_argnames=("num_actions",))
def beta_policy_forward(state, w_all, b_all, *, num_actions):
    """Pallas forward of BetaPolicy. Returns (log_alpha, log_beta)."""
    B, num_inputs = state.shape
    D = w_all.shape[-1]
    state = state.astype(jnp.float32)

    # Pad the batch to a sublane multiple only if needed (no-op for B % 8 == 0,
    # so the common case issues no extra XLA op).
    B_pad = _round_up(B, 8)
    if B_pad != B:
        state = jnp.pad(state, ((0, B_pad - B), (0, 0)))

    # Real (un-padded-to-128) work estimate for XLA's scheduler.
    cost = pl.CostEstimate(
        flops=2 * B_pad * D * (num_inputs + 2 * D),
        transcendentals=0,
        bytes_accessed=4 * (state.size + w_all.size + b_all.size + B_pad * D),
    )

    out = pl.pallas_call(
        functools.partial(_beta_policy_kernel, num_inputs=num_inputs),
        out_shape=jax.ShapeDtypeStruct((B_pad, D), jnp.float32),
        in_specs=[
            pl.BlockSpec(memory_space=pltpu.MemorySpace.VMEM),  # state  [B_pad, num_inputs]
            pl.BlockSpec(memory_space=pltpu.MemorySpace.VMEM),  # weights [3, D, D]
            pl.BlockSpec(memory_space=pltpu.MemorySpace.VMEM),  # biases  [3, D]
        ],
        out_specs=pl.BlockSpec(memory_space=pltpu.MemorySpace.VMEM),
        cost_estimate=cost,
    )(state, w_all, b_all)

    log_alpha = out[:B, :num_actions]
    log_beta = out[:B, num_actions:2 * num_actions]
    return log_alpha, log_beta


# ----------------------------------------------------------------------------
# Parameter init (matches torch: xavier_uniform_ weights, zero biases) + packing
# ----------------------------------------------------------------------------

def xavier_uniform(key, fan_in, fan_out, gain=1.0):
    limit = gain * (6.0 / (fan_in + fan_out)) ** 0.5
    # stored as [in, out] (pre-transposed relative to torch's [out, in])
    return jax.random.uniform(key, (fan_in, fan_out), jnp.float32, -limit, limit)


def init_beta_policy_params(key, num_inputs, num_actions, hidden_dim):
    k_in, k_h, k_a, k_b = jax.random.split(key, 4)
    w_in = xavier_uniform(k_in, num_inputs, hidden_dim)
    b_in = jnp.zeros((1, hidden_dim), jnp.float32)
    w_h = xavier_uniform(k_h, hidden_dim, hidden_dim)
    b_h = jnp.zeros((1, hidden_dim), jnp.float32)
    w_a = xavier_uniform(k_a, hidden_dim, num_actions)
    b_a = jnp.zeros((1, num_actions), jnp.float32)
    w_b = xavier_uniform(k_b, hidden_dim, num_actions)
    b_b = jnp.zeros((1, num_actions), jnp.float32)
    return (w_in, b_in, w_h, b_h, w_a, b_a, w_b, b_b)


def pack_beta_policy_params(params, *, num_inputs, num_actions, hidden_dim):
    """Zero-pad & stack everything into one [3, D, D] slab and one [3, D] slab.

    D is the real feature width rounded to sublane alignment (NOT 128); padded
    rows/cols and padded bias entries are exactly zero, so padded hidden units
    stay exactly zero through ReLU and the padded head lanes clamp to zero.
    """
    D = _round_up(max(num_inputs, hidden_dim, 2 * num_actions), 8)
    w_in, b_in, w_h, b_h, w_a, b_a, w_b, b_b = params

    w_all = jnp.zeros((3, D, D), jnp.float32)
    w_all = w_all.at[0, :num_inputs, :hidden_dim].set(w_in)
    w_all = w_all.at[1, :hidden_dim, :hidden_dim].set(w_h)
    w_all = w_all.at[2, :hidden_dim, :num_actions].set(w_a)
    w_all = w_all.at[2, :hidden_dim, num_actions:2 * num_actions].set(w_b)

    b_all = jnp.zeros((3, D), jnp.float32)
    b_all = b_all.at[0, :hidden_dim].set(b_in.reshape(-1))
    b_all = b_all.at[1, :hidden_dim].set(b_h.reshape(-1))
    b_all = b_all.at[2, :num_actions].set(b_a.reshape(-1))
    b_all = b_all.at[2, num_actions:2 * num_actions].set(b_b.reshape(-1))
    return w_all, b_all


def _reference_forward(state, params):
    w_in, b_in, w_h, b_h, w_a, b_a, w_b, b_b = params
    x = jnp.maximum(state @ w_in + b_in, 0.0)
    x = jnp.maximum(x @ w_h + b_h, 0.0)
    la = jnp.clip(x @ w_a + b_a, LOG_ALPHABETA_MIN, LOG_ALPHABETA_MAX)
    lb = jnp.clip(x @ w_b + b_b, LOG_ALPHABETA_MIN, LOG_ALPHABETA_MAX)
    return la, lb


if __name__ == "__main__":
    key = jax.random.PRNGKey(0)
    k_params, k_state = jax.random.split(key)

    batch = 8
    num_inputs = 16
    num_actions = 4
    hidden_dim = 32

    params = init_beta_policy_params(k_params, num_inputs, num_actions, hidden_dim)
    w_all, b_all = pack_beta_policy_params(
        params, num_inputs=num_inputs, num_actions=num_actions, hidden_dim=hidden_dim
    )
    state = jax.random.normal(k_state, (batch, num_inputs), jnp.float32)

    log_alpha, log_beta = beta_policy_forward(
        state, w_all, b_all, num_actions=num_actions
    )
    jax.block_until_ready((log_alpha, log_beta))

    # correctness check against pure-JAX reference (unpacked params)
    ref_la, ref_lb = _reference_forward(state, params)
    assert log_alpha.shape == (batch, num_actions)
    assert log_beta.shape == (batch, num_actions)
    assert jnp.allclose(log_alpha, ref_la, atol=1e-5, rtol=1e-5)
    assert jnp.allclose(log_beta, ref_lb, atol=1e-5, rtol=1e-5)

    print("KERNEL_OK")
</pallas_src>

<mosaic_0001>
module attributes {stable_mosaic.version = 11 : i64} {
  func.func @_beta_policy_kernel(%arg0: memref<8x16xf32, #tpu.memory_space<vmem>>, %arg1: memref<3x32x32xf32, #tpu.memory_space<vmem>>, %arg2: memref<3x32xf32, #tpu.memory_space<vmem>>, %arg3: memref<8x32xf32, #tpu.memory_space<vmem>>) attributes {dimension_semantics = [], scalar_prefetch = 0 : i64, scratch_operands = 0 : i64, tpu.core_type = #tpu.core_type<tc>} {
    %c0 = arith.constant 0 : index
    %c0_0 = arith.constant 0 : index
    %0 = vector.load %arg0[%c0, %c0_0] : memref<8x16xf32, #tpu.memory_space<vmem>>, vector<8x16xf32>
    %c0_1 = arith.constant 0 : index
    %c0_2 = arith.constant 0 : index
    %c0_3 = arith.constant 0 : index
    %1 = vector.load %arg1[%c0_1, %c0_2, %c0_3] : memref<3x32x32xf32, #tpu.memory_space<vmem>>, vector<1x32x32xf32>
    %2 = vector.shape_cast %1 : vector<1x32x32xf32> to vector<32x32xf32>
    %3 = vector.extract_strided_slice %2 {offsets = [0, 0], sizes = [16, 32], strides = [1, 1]} : vector<32x32xf32> to vector<16x32xf32>
    %cst = arith.constant dense<0.000000e+00> : vector<8x32xf32>
    %4 = tpu.matmul %0, %3, %cst {dimension_numbers = #tpu.dot_dimension_numbers<[1], [0], [0], [1], [0, 0, 1, 1], [], []>} : vector<8x16xf32>, vector<16x32xf32>, vector<8x32xf32> -> vector<8x32xf32>
    %c0_4 = arith.constant 0 : index
    %c0_5 = arith.constant 0 : index
    %5 = vector.load %arg2[%c0_4, %c0_5] : memref<3x32xf32, #tpu.memory_space<vmem>>, vector<1x32xf32>
    %6 = vector.broadcast %5 : vector<1x32xf32> to vector<8x32xf32>
    %7 = arith.addf %4, %6 : vector<8x32xf32>
    %cst_6 = arith.constant 0.000000e+00 : f32
    %8 = vector.broadcast %cst_6 : f32 to vector<8x32xf32>
    %9 = arith.maximumf %7, %8 : vector<8x32xf32>
    %c1 = arith.constant 1 : index
    %c0_7 = arith.constant 0 : index
    %c0_8 = arith.constant 0 : index
    %10 = vector.load %arg1[%c1, %c0_7, %c0_8] : memref<3x32x32xf32, #tpu.memory_space<vmem>>, vector<1x32x32xf32>
    %11 = vector.shape_cast %10 : vector<1x32x32xf32> to vector<32x32xf32>
    %cst_9 = arith.constant dense<0.000000e+00> : vector<8x32xf32>
    %12 = tpu.matmul %9, %11, %cst_9 {dimension_numbers = #tpu.dot_dimension_numbers<[1], [0], [0], [1], [0, 0, 1, 1], [], []>} : vector<8x32xf32>, vector<32x32xf32>, vector<8x32xf32> -> vector<8x32xf32>
    %c1_10 = arith.constant 1 : index
    %c0_11 = arith.constant 0 : index
    %13 = vector.load %arg2[%c1_10, %c0_11] : memref<3x32xf32, #tpu.memory_space<vmem>>, vector<1x32xf32>
    %14 = vector.broadcast %13 : vector<1x32xf32> to vector<8x32xf32>
    %15 = arith.addf %12, %14 : vector<8x32xf32>
    %cst_12 = arith.constant 0.000000e+00 : f32
    %16 = vector.broadcast %cst_12 : f32 to vector<8x32xf32>
    %17 = arith.maximumf %15, %16 : vector<8x32xf32>
    %c2 = arith.constant 2 : index
    %c0_13 = arith.constant 0 : index
    %c0_14 = arith.constant 0 : index
    %18 = vector.load %arg1[%c2, %c0_13, %c0_14] : memref<3x32x32xf32, #tpu.memory_space<vmem>>, vector<1x32x32xf32>
    %19 = vector.shape_cast %18 : vector<1x32x32xf32> to vector<32x32xf32>
    %cst_15 = arith.constant dense<0.000000e+00> : vector<8x32xf32>
    %20 = tpu.matmul %17, %19, %cst_15 {dimension_numbers = #tpu.dot_dimension_numbers<[1], [0], [0], [1], [0, 0, 1, 1], [], []>} : vector<8x32xf32>, vector<32x32xf32>, vector<8x32xf32> -> vector<8x32xf32>
    %c2_16 = arith.constant 2 : index
    %c0_17 = arith.constant 0 : index
    %21 = vector.load %arg2[%c2_16, %c0_17] : memref<3x32xf32, #tpu.memory_space<vmem>>, vector<1x32xf32>
    %22 = vector.broadcast %21 : vector<1x32xf32> to vector<8x32xf32>
    %23 = arith.addf %20, %22 : vector<8x32xf32>
    %cst_18 = arith.constant -1.000000e+01 : f32
    %cst_19 = arith.constant 1.000000e+01 : f32
    %24 = vector.broadcast %cst_18 : f32 to vector<8x32xf32>
    %25 = arith.maximumf %24, %23 : vector<8x32xf32>
    %26 = vector.broadcast %cst_19 : f32 to vector<8x32xf32>
    %27 = arith.minimumf %26, %25 : vector<8x32xf32>
    %c0_20 = arith.constant 0 : index
    %c0_21 = arith.constant 0 : index
    %28 = vector.load %arg3[%c0_20, %c0_21] : memref<8x32xf32, #tpu.memory_space<vmem>>, vector<8x32xf32>
    tpu.vector_store %arg3[%c0_20, %c0_21], %27 {strides = array<i32>} : memref<8x32xf32, #tpu.memory_space<vmem>>, vector<8x32xf32>,
    return
  }
}

</mosaic_0001>

<llo_original>
// kernel: beta_policy_forward.1
$region0: #{beta_policy_forward.1}
  #allocation0 [shape = 'u32[]', space=smem, size = 0x4, offset = 0x4, fixed_abs, tag = 'smem constant byte address 0x4 - core index']
  #allocation1 [shape = 'u32[144,128]{1,0:T(1,128)}', space=vmem, size = 0x12000, scoped, tag = 'internal scratch']
  %s0 = inlined_call_operand.hbm [shape: f32[8,16], index: 0, kind: input, shape index: {}]
  %s1 = inlined_call_operand.hbm [shape: f32[3,32,32], index: 1, kind: input, shape index: {}]
  %s2 = inlined_call_operand.vmem [shape: f32[3,32], index: 2, kind: input, shape index: {}]
  %s3 = inlined_call_operand.vmem [shape: f32[8,32], index: 3, kind: output, shape index: {}]
  %s4 = sld [smem:[#allocation0]]
  $region30: #{beta_policy_forward.1} parent=0
    _
  %s6 = ssub.s32 1, %s4
  %s7 = scalar_select 0, %s6, %s4
  $region1: #{beta_policy_forward.1} parent=0
    #allocation2 [shape = 'u8[4096]{0}', space=vmem, size = 0x1000, scoped, tag = 'input window, operand 0, single buffered']
    #allocation3 [shape = 's32[1]{0}', space=sflag, size = 0x4, scoped, tag = 'scoped memory for beta_policy_forward.1']
    #allocation4 [shape = 'u8[49152]{0}', space=vmem, size = 0xc000, scoped, tag = 'input window, operand 1, single buffered']
    #allocation5 [shape = 's32[1]{0}', space=sflag, size = 0x4, scoped, tag = 'scoped memory for beta_policy_forward.1']
    %8 = vsyncpa [#allocation3], 0
    %9 = vsyncpa [#allocation5], 0
    // Predicated region
    $region2: #{beta_policy_forward.1} parent=1 // pred_check
      _
    $region3: #{beta_policy_forward.1} parent=1 // pred_check_branch
      %11 = sbr.rel (0) target = $region5
    $region4: #{beta_policy_forward.1} parent=1 // pred_region
      %s13 = ssub.s32 128, 128
      %14 = vsyncadd [#allocation3], %s13
      %s16 = sshll.u32 [#allocation2], 4
      %s17 = int_to_ptr.vmem [resolvable:$true] %s16
      %19 = dma.hbm_to_vmem [thread:$0]  %s0, 128, %s17, [#allocation3]
    $region5: #{beta_policy_forward.1} parent=1 // pred_fallthru
      _
    // Predicated region
    $region6: #{beta_policy_forward.1} parent=1 // pred_check
      _
    $region7: #{beta_policy_forward.1} parent=1 // pred_check_branch
      %21 = sbr.rel (0) target = $region9
    $region8: #{beta_policy_forward.1} parent=1 // pred_region
      %s23 = ssub.s32 1536, 1536
      %24 = vsyncadd [#allocation5], %s23
      %s25 = sshll.u32 [#allocation4], 4
      %s26 = int_to_ptr.vmem [resolvable:$true] %s25
      %31 = dma.hbm_to_vmem [thread:$0]  %s1, 1536, %s26, [#allocation5], 128, 128, 8
    $region9: #{beta_policy_forward.1} parent=1 // pred_fallthru
      _
    // Predicated region
    $region10: #{beta_policy_forward.1} parent=1 // pred_check
      _
    $region11: #{beta_policy_forward.1} parent=1 // pred_check_branch
      %33 = sbr.rel (0) target = $region13
    $region12: #{beta_policy_forward.1} parent=1 // pred_region
      _
    $region13: #{beta_policy_forward.1} parent=1 // pred_fallthru
      _
    // Predicated region
    $region14: #{beta_policy_forward.1} parent=1 // pred_check
      _
    $region15: #{beta_policy_forward.1} parent=1 // pred_check_branch
      %35 = sbr.rel (0) target = $region17
    $region16: #{beta_policy_forward.1} parent=1 // pred_region
      %36 = dma.done [#allocation3], 128
    $region17: #{beta_policy_forward.1} parent=1 // pred_fallthru
      _
    // Predicated region
    $region18: #{beta_policy_forward.1} parent=1 // pred_check
      _
    $region19: #{beta_policy_forward.1} parent=1 // pred_check_branch
      %38 = sbr.rel (0) target = $region21
    $region20: #{beta_policy_forward.1} parent=1 // pred_region
      %39 = dma.done [#allocation5], 1536
    $region21: #{beta_policy_forward.1} parent=1 // pred_fallthru
      _
    %v40 = vld [vmem:[#allocation2] sm:$0xff]
    %v41 = vld [vmem:[#allocation4] sm:$0xff]
    %v42 = vld [vmem:[#allocation4 + $0x8] sm:$0xff]
    %v43 = vld [vmem:[%s2] sm:$0x1]
    %v44 = vlaneseq
    %v45 = vshrl.u32 %v44, 7
    %v46 = vsub.s32 0, %v45
    %v47 = vrot.slane %v43, %v46
    %vm48 = vcmask 130048
    %v50 = vsel %vm48, %v40, 0
    %52 = vmatprep.subr.mxu0 0.0
    %53 = vmatpush1.msra.mxu0 %v41
    %54 = vmatprep.subr.mxu0 0.0
    %55 = vmatpush1.msra.mxu0 %v42
    %56 = vmatprep.subr.mxu0 0.0
    %57 = vmatpush1.msra.mxu0 0.0
    %58 = vmatprep.subr.mxu0 0.0
    %59 = vmatpush1.msra.mxu0 0.0
    %60 = vmatprep.subr.mxu0 0.0
    %61 = vmatpush1.msra.mxu0 0.0
    %62 = vmatprep.subr.mxu0 0.0
    %63 = vmatpush1.msra.mxu0 0.0
    %64 = vmatprep.subr.mxu0 0.0
    %65 = vmatpush1.msra.mxu0 0.0
    %66 = vmatprep.subr.mxu0 0.0
    %67 = vmatpush1.msra.mxu0 0.0
    %68 = vmatprep.subr.mxu0 0.0
    %69 = vmatpush1.msra.mxu0 0.0
    %70 = vmatprep.subr.mxu0 0.0
    %71 = vmatpush1.msra.mxu0 0.0
    %72 = vmatprep.subr.mxu0 0.0
    %73 = vmatpush1.msra.mxu0 0.0
    %74 = vmatprep.subr.mxu0 0.0
    %75 = vmatpush1.msra.mxu0 0.0
    %76 = vmatprep.subr.mxu0 0.0
    %77 = vmatpush1.msra.mxu0 0.0
    %78 = vmatprep.subr.mxu0 0.0
    %79 = vmatpush1.msra.mxu0 0.0
    %80 = vmatprep.subr.mxu0 0.0
    %81 = vmatpush1.msra.mxu0 0.0
    %82 = vmatprep.subr.mxu0 0.0
    %83 = vmatpush1.msra.mxu0 0.0
    %84 = vmatprep.subr.mxu0 0.0
    %85 = vmatpush1.msra.mxu0 0.0
    %86 = vmatprep.subr.mxu0 0.0
    %87 = vmatpush1.msra.mxu0 0.0
    %88 = vmatprep.subr.mxu0 0.0
    %89 = vmatpush1.msra.mxu0 0.0
    %90 = vmatprep.subr.mxu0 0.0
    %91 = vmatpush1.msra.mxu0 0.0
    %92 = vmatprep.subr.mxu0 0.0
    %93 = vmatpush1.msra.mxu0 0.0
    %94 = vmatprep.subr.mxu0 0.0
    %95 = vmatpush1.msra.mxu0 0.0
    %96 = vmatprep.subr.mxu0 0.0
    %97 = vmatpush1.msra.mxu0 0.0
    %98 = vmatprep.subr.mxu0 0.0
    %99 = vmatpush1.msra.mxu0 0.0
    %100 = vmatprep.subr.mxu0 0.0
    %101 = vmatpush1.msra.mxu0 0.0
    %102 = vmatprep.subr.mxu0 0.0
    %103 = vmatpush1.msra.mxu0 0.0
    %104 = vmatprep.subr.mxu0 0.0
    %105 = vmatpush1.msra.mxu0 0.0
    %106 = vmatprep.subr.mxu0 0.0
    %107 = vmatpush1.msra.mxu0 0.0
    %108 = vmatprep.subr.mxu0 0.0
    %109 = vmatpush1.msra.mxu0 0.0
    %110 = vmatprep.subr.mxu0 0.0
    %111 = vmatpush1.msra.mxu0 0.0
    %112 = vmatprep.subr.mxu0 0.0
    %113 = vmatpush1.msra.mxu0 0.0
    %114 = vmatprep.subr.mxu0 0.0
    %115 = vmatpush1.msra.mxu0 0.0
    %116 = vmatprep.mubr.f32.mxu0 0.0
    %117 = vmatmul.mubr.f32.gmra.mrb[0].mxu0 %v50
    %v118 = vpop.f32.mrb[0].mxu0
    %v119 = vadd.f32 %v47, %v118
    %v120 = vpop.f32.mrb[0].mxu0
    %121 = vdwg.mxu0
    %v122 = vmax.f32 %v119, 0.0
    %s123 = scalar_lea.vmem [#allocation4], 32
    %v124 = vld [vmem:[%s123] sm:$0xff]
    %v125 = vld [vmem:[%s123 + $0x8] sm:$0xff]
    %v126 = vld [vmem:[%s123 + $0x10] sm:$0xff]
    %v127 = vld [vmem:[%s123 + $0x18] sm:$0xff]
    %v128 = vld [vmem:[%s2 + $0x1] sm:$0x1]
    %v129 = vlaneseq
    %v130 = vshrl.u32 %v129, 7
    %v131 = vsub.s32 0, %v130
    %v132 = vrot.slane %v128, %v131
    %vm133 = vcmask 261120
    %v135 = vsel %vm133, %v122, 0
    %137 = vmatprep.subr.mxu0 0.0
    %138 = vmatpush1.msra.mxu0 %v124
    %139 = vmatprep.subr.mxu0 0.0
    %140 = vmatpush1.msra.mxu0 %v125
    %141 = vmatprep.subr.mxu0 0.0
    %142 = vmatpush1.msra.mxu0 %v126
    %143 = vmatprep.subr.mxu0 0.0
    %144 = vmatpush1.msra.mxu0 %v127
    %145 = vmatprep.subr.mxu0 0.0
    %146 = vmatpush1.msra.mxu0 0.0
    %147 = vmatprep.subr.mxu0 0.0
    %148 = vmatpush1.msra.mxu0 0.0
    %149 = vmatprep.subr.mxu0 0.0
    %150 = vmatpush1.msra.mxu0 0.0
    %151 = vmatprep.subr.mxu0 0.0
    %152 = vmatpush1.msra.mxu0 0.0
    %153 = vmatprep.subr.mxu0 0.0
    %154 = vmatpush1.msra.mxu0 0.0
    %155 = vmatprep.subr.mxu0 0.0
    %156 = vmatpush1.msra.mxu0 0.0
    %157 = vmatprep.subr.mxu0 0.0
    %158 = vmatpush1.msra.mxu0 0.0
    %159 = vmatprep.subr.mxu0 0.0
    %160 = vmatpush1.msra.mxu0 0.0
    %161 = vmatprep.subr.mxu0 0.0
    %162 = vmatpush1.msra.mxu0 0.0
    %163 = vmatprep.subr.mxu0 0.0
    %164 = vmatpush1.msra.mxu0 0.0
    %165 = vmatprep.subr.mxu0 0.0
    %166 = vmatpush1.msra.mxu0 0.0
    %167 = vmatprep.subr.mxu0 0.0
    %168 = vmatpush1.msra.mxu0 0.0
    %169 = vmatprep.subr.mxu0 0.0
    %170 = vmatpush1.msra.mxu0 0.0
    %171 = vmatprep.subr.mxu0 0.0
    %172 = vmatpush1.msra.mxu0 0.0
    %173 = vmatprep.subr.mxu0 0.0
    %174 = vmatpush1.msra.mxu0 0.0
    %175 = vmatprep.subr.mxu0 0.0
    %176 = vmatpush1.msra.mxu0 0.0
    %177 = vmatprep.subr.mxu0 0.0
    %178 = vmatpush1.msra.mxu0 0.0
    %179 = vmatprep.subr.mxu0 0.0
    %180 = vmatpush1.msra.mxu0 0.0
    %181 = vmatprep.subr.mxu0 0.0
    %182 = vmatpush1.msra.mxu0 0.0
    %183 = vmatprep.subr.mxu0 0.0
    %184 = vmatpush1.msra.mxu0 0.0
    %185 = vmatprep.subr.mxu0 0.0
    %186 = vmatpush1.msra.mxu0 0.0
    %187 = vmatprep.subr.mxu0 0.0
    %188 = vmatpush1.msra.mxu0 0.0
    %189 = vmatprep.subr.mxu0 0.0
    %190 = vmatpush1.msra.mxu0 0.0
    %191 = vmatprep.subr.mxu0 0.0
    %192 = vmatpush1.msra.mxu0 0.0
    %193 = vmatprep.subr.mxu0 0.0
    %194 = vmatpush1.msra.mxu0 0.0
    %195 = vmatprep.subr.mxu0 0.0
    %196 = vmatpush1.msra.mxu0 0.0
    %197 = vmatprep.subr.mxu0 0.0
    %198 = vmatpush1.msra.mxu0 0.0
    %199 = vmatprep.subr.mxu0 0.0
    %200 = vmatpush1.msra.mxu0 0.0
    %201 = vmatprep.mubr.f32.mxu0 0.0
    %202 = vmatmul.mubr.f32.gmra.mrb[0].mxu0 %v135
    %v203 = vpop.f32.mrb[0].mxu0
    %v204 = vadd.f32 %v132, %v203
    %v205 = vpop.f32.mrb[0].mxu0
    %206 = vdwg.mxu0
    %v207 = vmax.f32 %v204, 0.0
    %s208 = scalar_lea.vmem [#allocation4], 64
    %v209 = vld [vmem:[%s208] sm:$0xff]
    %v210 = vld [vmem:[%s208 + $0x8] sm:$0xff]
    %v211 = vld [vmem:[%s208 + $0x10] sm:$0xff]
    %v212 = vld [vmem:[%s208 + $0x18] sm:$0xff]
    %v213 = vld [vmem:[%s2 + $0x2] sm:$0x1]
    %v214 = vlaneseq
    %v215 = vshrl.u32 %v214, 7
    %v216 = vsub.s32 0, %v215
    %v217 = vrot.slane %v213, %v216
    %v219 = vsel %vm133, %v207, 0
    %221 = vmatprep.subr.mxu0 0.0
    %222 = vmatpush1.msra.mxu0 %v209
    %223 = vmatprep.subr.mxu0 0.0
    %224 = vmatpush1.msra.mxu0 %v210
    %225 = vmatprep.subr.mxu0 0.0
    %226 = vmatpush1.msra.mxu0 %v211
    %227 = vmatprep.subr.mxu0 0.0
    %228 = vmatpush1.msra.mxu0 %v212
    %229 = vmatprep.subr.mxu0 0.0
    %230 = vmatpush1.msra.mxu0 0.0
    %231 = vmatprep.subr.mxu0 0.0
    %232 = vmatpush1.msra.mxu0 0.0
    %233 = vmatprep.subr.mxu0 0.0
    %234 = vmatpush1.msra.mxu0 0.0
    %235 = vmatprep.subr.mxu0 0.0
    %236 = vmatpush1.msra.mxu0 0.0
    %237 = vmatprep.subr.mxu0 0.0
    %238 = vmatpush1.msra.mxu0 0.0
    %239 = vmatprep.subr.mxu0 0.0
    %240 = vmatpush1.msra.mxu0 0.0
    %241 = vmatprep.subr.mxu0 0.0
    %242 = vmatpush1.msra.mxu0 0.0
    %243 = vmatprep.subr.mxu0 0.0
    %244 = vmatpush1.msra.mxu0 0.0
    %245 = vmatprep.subr.mxu0 0.0
    %246 = vmatpush1.msra.mxu0 0.0
    %247 = vmatprep.subr.mxu0 0.0
    %248 = vmatpush1.msra.mxu0 0.0
    %249 = vmatprep.subr.mxu0 0.0
    %250 = vmatpush1.msra.mxu0 0.0
    %251 = vmatprep.subr.mxu0 0.0
    %252 = vmatpush1.msra.mxu0 0.0
    %253 = vmatprep.subr.mxu0 0.0
    %254 = vmatpush1.msra.mxu0 0.0
    %255 = vmatprep.subr.mxu0 0.0
    %256 = vmatpush1.msra.mxu0 0.0
    %257 = vmatprep.subr.mxu0 0.0
    %258 = vmatpush1.msra.mxu0 0.0
    %259 = vmatprep.subr.mxu0 0.0
    %260 = vmatpush1.msra.mxu0 0.0
    %261 = vmatprep.subr.mxu0 0.0
    %262 = vmatpush1.msra.mxu0 0.0
    %263 = vmatprep.subr.mxu0 0.0
    %264 = vmatpush1.msra.mxu0 0.0
    %265 = vmatprep.subr.mxu0 0.0
    %266 = vmatpush1.msra.mxu0 0.0
    %267 = vmatprep.subr.mxu0 0.0
    %268 = vmatpush1.msra.mxu0 0.0
    %269 = vmatprep.subr.mxu0 0.0
    %270 = vmatpush1.msra.mxu0 0.0
    %271 = vmatprep.subr.mxu0 0.0
    %272 = vmatpush1.msra.mxu0 0.0
    %273 = vmatprep.subr.mxu0 0.0
    %274 = vmatpush1.msra.mxu0 0.0
    %275 = vmatprep.subr.mxu0 0.0
    %276 = vmatpush1.msra.mxu0 0.0
    %277 = vmatprep.subr.mxu0 0.0
    %278 = vmatpush1.msra.mxu0 0.0
    %279 = vmatprep.subr.mxu0 0.0
    %280 = vmatpush1.msra.mxu0 0.0
    %281 = vmatprep.subr.mxu0 0.0
    %282 = vmatpush1.msra.mxu0 0.0
    %283 = vmatprep.subr.mxu0 0.0
    %284 = vmatpush1.msra.mxu0 0.0
    %285 = vmatprep.mubr.f32.mxu0 0.0
    %286 = vmatmul.mubr.f32.gmra.mrb[0].mxu0 %v219
    %v287 = vpop.f32.mrb[0].mxu0
    %v288 = vadd.f32 %v217, %v287
    %v289 = vpop.f32.mrb[0].mxu0
    %290 = vdwg.mxu0
    %v291 = vmax.f32 %v288, -10.0
    %v292 = vmin.f32 %v291, 10.0
    %293 = vst.msk [vmem:[%s3] sm:$0xff] %vm133, %v292
    // Predicated region
    $region22: #{beta_policy_forward.1} parent=1 // pred_check
      _
    $region23: #{beta_policy_forward.1} parent=1 // pred_check_branch
      %295 = sbr.rel (0) target = $region25
    $region24: #{beta_policy_forward.1} parent=1 // pred_region
      _
    $region25: #{beta_policy_forward.1} parent=1 // pred_fallthru
      _
    // Predicated region
    $region26: #{beta_policy_forward.1} parent=1 // pred_check
      _
    $region27: #{beta_policy_forward.1} parent=1 // pred_check_branch
      %297 = sbr.rel (0) target = $region29
    $region28: #{beta_policy_forward.1} parent=1 // pred_region
      _
    $region29: #{beta_policy_forward.1} parent=1 // pred_fallthru
      _
    %298 = vsyncpa [#allocation3], 1
    %299 = vsyncpa [#allocation5], 1

</llo_original>
